<compile_context>
chip_gen: v7x
topology: tpu7x:2x2x1
jax: 0.10.0
libtpu: 0.0.40
codegen_flags: <defaults>
</compile_context>

<pallas_src>
import functools

import jax
import jax.numpy as jnp
from jax.experimental import pallas as pl
from jax.experimental.pallas import tpu as pltpu


# ----------------------------------------------------------------------------
# Kernel
# ----------------------------------------------------------------------------
def _fused_conv_module_kernel(x_ref, *refs, relu_flags, bn):
    """Fused 1x1-conv stack on one (bn, Cin, tile_l) tile.

    refs = (w0, b0, w1, b1, ..., w_{n-1}, b_{n-1}, out_ref)
      w_i: (Cout_i, Cin_i), b_i: (Cout_i, 1), out: (bn, Cout_last, tile_l)
    """
    n_layers = len(relu_flags)
    out_ref = refs[2 * n_layers]
    # Weights/biases are tiny, constant-index VMEM blocks: load once per step.
    ws = [refs[2 * i][...] for i in range(n_layers)]
    bs = [refs[2 * i + 1][...] for i in range(n_layers)]

    for b in range(bn):                                  # static unroll
        h = x_ref[b].astype(jnp.float32)                 # (Cin, tile_l)
        for w, bias, relu in zip(ws, bs, relu_flags):
            h = jnp.dot(w, h, preferred_element_type=jnp.float32) + bias
            if relu:
                h = jnp.maximum(h, 0.0)
        out_ref[b] = h.astype(out_ref.dtype)


# ----------------------------------------------------------------------------
# Tiling heuristic (review items: big lane tiles, batch blocking, VMEM budget)
# ----------------------------------------------------------------------------
def _choose_tiling(N, L, Cin, Cout, c_max, in_itemsize, out_itemsize,
                   *, max_tile_l=4096, vmem_budget=24 << 20, min_steps=4):
    """Pick (tile_l, bn).

    tile_l: largest multiple of 128 (preferring exact divisors of L, so no
            pad/slice HBM passes are needed) that fits the VMEM budget and still
            leaves >= min_steps grid steps.
    bn    : batch rows per grid step, grown while steps stay >= min_steps and
            the per-step footprint stays under the VMEM budget, to amortize the
            fixed per-step cost.
    """
    lane = 128
    L_ceil = pl.cdiv(L, lane) * lane

    if L % lane == 0:
        cands = [t for t in range(lane, min(L, max_tile_l) + 1, lane) if L % t == 0]
    else:
        cands = list(range(lane, min(L_ceil, max_tile_l) + 1, lane))
    if not cands:
        cands = [lane]

    def tile_vmem(t, b):
        # double-buffered input + output tiles, plus the widest f32 intermediate
        io = 2 * b * (Cin * in_itemsize + Cout * out_itemsize) * t
        inter = c_max * 4 * t
        return io + inter

    fitting = [t for t in cands if tile_vmem(t, 1) <= vmem_budget]
    if not fitting:
        fitting = [cands[0]]

    tile_l = None
    for t in sorted(fitting, reverse=True):
        if N * pl.cdiv(L, t) >= min_steps:
            tile_l = t
            break
    if tile_l is None:                    # tiny problem: take the biggest tile
        tile_l = max(fitting)

    n_l_tiles = pl.cdiv(L, tile_l)
    bn = 1
    step_bytes_target = 1 << 20           # ~1 MiB per step amortizes 0.35 us
    for cand in sorted(d for d in range(1, N + 1) if N % d == 0):
        if cand > 1 and (N // cand) * n_l_tiles < min_steps:
            break
        if tile_vmem(tile_l, cand) > vmem_budget:
            break
        bn = cand
        if cand * (Cin * in_itemsize + Cout * out_itemsize) * tile_l >= step_bytes_target:
            break
    return tile_l, bn


# ----------------------------------------------------------------------------
# Wrapper
# ----------------------------------------------------------------------------
def conv_module_forward(x_ncl, params, *, tile_l=None, bn=None,
                        out_dtype=None):
    """x_ncl: (N, Cin, L) like PyTorch NCL. Returns (N, Cout, L)."""
    N, Cin, L = x_ncl.shape
    relu_flags = tuple(bool(p["relu"]) for p in params)
    Cout = params[-1]["w"].shape[0]
    c_max = max(max(p["w"].shape) for p in params)
    out_dtype = x_ncl.dtype if out_dtype is None else out_dtype

    if tile_l is None or bn is None:
        auto_t, auto_bn = _choose_tiling(
            N, L, Cin, Cout, c_max,
            jnp.dtype(x_ncl.dtype).itemsize, jnp.dtype(out_dtype).itemsize)
        tile_l = auto_t if tile_l is None else tile_l
        bn = auto_bn if bn is None else bn
    assert tile_l % 128 == 0, "tile_l must be a multiple of the 128-lane width"
    assert N % bn == 0, "bn must divide the batch size"

    # Pad L only when no lane-aligned tile divides it (extra HBM pass otherwise).
    L_pad = pl.cdiv(L, tile_l) * tile_l
    x_in = x_ncl
    if L_pad != L:
        x_in = jnp.pad(x_ncl, ((0, 0), (0, 0), (0, L_pad - L)))

    grid = (N // bn, L_pad // tile_l)

    in_specs = [pl.BlockSpec((bn, Cin, tile_l), lambda n, j: (n, 0, j))]
    operands = [x_in]
    for p in params:
        co, ci = p["w"].shape
        # Constant-index tiny weight/bias blocks: VMEM-resident across the grid.
        in_specs.append(pl.BlockSpec((co, ci), lambda n, j: (0, 0)))
        in_specs.append(pl.BlockSpec((co, 1), lambda n, j: (0, 0)))
        operands.append(p["w"])
        operands.append(p["b"])

    out_spec = pl.BlockSpec((bn, Cout, tile_l), lambda n, j: (n, 0, j))

    # Advisory cost estimate: one HBM pass over x and out, plus weights.
    itemsize_in = jnp.dtype(x_in.dtype).itemsize
    itemsize_out = jnp.dtype(out_dtype).itemsize
    flops = 2 * N * L * sum(p["w"].shape[0] * p["w"].shape[1] for p in params)
    bytes_accessed = (N * Cin * L_pad * itemsize_in
                      + N * Cout * L_pad * itemsize_out
                      + sum(p["w"].size * 4 + p["b"].size * 4 for p in params))
    cost = pl.CostEstimate(flops=int(flops), transcendentals=0,
                           bytes_accessed=int(bytes_accessed))

    # VMEM budget: keep >= default 32 MiB, never above v7x's 64 MiB physical.
    est_vmem = (2 * bn * (Cin * itemsize_in + Cout * itemsize_out) * tile_l
                + c_max * 4 * tile_l
                + sum(p["w"].size * 4 + p["b"].size * 4 for p in params))
    vmem_limit = int(min(64 << 20, max(32 << 20, 2 * est_vmem)))

    kernel = functools.partial(_fused_conv_module_kernel,
                               relu_flags=relu_flags, bn=bn)
    out = pl.pallas_call(
        kernel,
        out_shape=jax.ShapeDtypeStruct((N, Cout, L_pad), out_dtype),
        grid_spec=pltpu.PrefetchScalarGridSpec(
            num_scalar_prefetch=0,
            grid=grid,
            in_specs=in_specs,
            out_specs=out_spec,
        ),
        compiler_params=pltpu.CompilerParams(
            dimension_semantics=("parallel", "parallel"),
            vmem_limit_bytes=vmem_limit),
        cost_estimate=cost,
    )(*operands)

    if L_pad != L:
        out = out[:, :, :L]
    return out


# ----------------------------------------------------------------------------
# Parameter construction (conv bias + eval-mode BN folded) and reference
# ----------------------------------------------------------------------------
def make_conv_module_params(key, nb_in, nb_out, inter_list, no_act_last,
                            eps=1e-5):
    """Deterministic Conv_Module params with conv-bias + eval-mode BN folded in."""
    dims = [nb_in] + list(inter_list) + [nb_out]
    n_layers = len(dims) - 1
    params = []
    for li in range(n_layers):
        cin, cout = dims[li], dims[li + 1]
        key, k1, k2, k3, k4, k5, k6 = jax.random.split(key, 7)
        # Conv1d weight (cout, cin, 1) -> (cout, cin); bias (cout,)
        w = jax.random.normal(k1, (cout, cin), jnp.float32) * 0.1
        b = jax.random.normal(k2, (cout,), jnp.float32) * 0.1
        last = li == n_layers - 1
        has_bn = not (last and no_act_last)
        if has_bn:
            gamma = 1.0 + 0.1 * jax.random.normal(k3, (cout,), jnp.float32)
            beta = 0.1 * jax.random.normal(k4, (cout,), jnp.float32)
            mean = 0.1 * jax.random.normal(k5, (cout,), jnp.float32)
            var = jnp.abs(jax.random.normal(k6, (cout,), jnp.float32)) + 0.5
            s = gamma / jnp.sqrt(var + eps)           # fold BN (eval) into conv
            w_f = w * s[:, None]
            b_f = b * s + (beta - mean * s)
        else:
            w_f, b_f = w, b
        params.append(dict(w=w_f, b=b_f[:, None], relu=has_bn))
    return params


def conv_module_ref(x_ncl, params):
    """Pure-JAX reference (same folded params) for correctness checking."""
    h = x_ncl.astype(jnp.float32)
    for p in params:
        y = jnp.einsum("oc,ncl->nol", p["w"], h) + p["b"][None]
        if p["relu"]:
            y = jnp.maximum(y, 0.0)
        h = y
    return h


if __name__ == "__main__":
    key = jax.random.PRNGKey(0)
    kx, kp, kx2, kp2 = jax.random.split(key, 4)

    # Case 1: Conv_Module(nb_in=4, nb_out=8, inter_list=[16], no_act_last=False)
    nb_in, nb_out, inter_list, no_act_last = 4, 8, [16], False
    N, L = 2, 512
    x = jax.random.normal(kx, (N, nb_in, L), jnp.float32)
    params = make_conv_module_params(kp, nb_in, nb_out, inter_list, no_act_last)
    out = jax.block_until_ready(conv_module_forward(x, params))
    ref = conv_module_ref(x, params)
    assert out.shape == (N, nb_out, L)
    assert jnp.allclose(out, ref, atol=1e-4, rtol=1e-4), "mismatch vs reference (case 1)"

    # Case 2: single layer, no BN/ReLU (no_act_last=True), L not lane-aligned
    # (exercises the pad/slice fallback path).
    nb_in2, nb_out2 = 4, 8
    N2, L2 = 2, 200
    x2 = jax.random.normal(kx2, (N2, nb_in2, L2), jnp.float32)
    params2 = make_conv_module_params(kp2, nb_in2, nb_out2, [], True)
    out2 = jax.block_until_ready(conv_module_forward(x2, params2))
    ref2 = conv_module_ref(x2, params2)
    assert out2.shape == (N2, nb_out2, L2)
    assert jnp.allclose(out2, ref2, atol=1e-4, rtol=1e-4), "mismatch vs reference (case 2)"

    print("KERNEL_OK")
</pallas_src>

<mosaic_0001>
module attributes {stable_mosaic.version = 11 : i64} {
  func.func @_fused_conv_module_kernel(%arg0: i32, %arg1: i32, %arg2: memref<1x4x256xf32, #tpu.memory_space<vmem>>, %arg3: memref<16x4xf32, #tpu.memory_space<vmem>>, %arg4: memref<16x1xf32, #tpu.memory_space<vmem>>, %arg5: memref<8x16xf32, #tpu.memory_space<vmem>>, %arg6: memref<8x1xf32, #tpu.memory_space<vmem>>, %arg7: memref<1x8x256xf32, #tpu.memory_space<vmem>>) attributes {dimension_semantics = [#tpu.dimension_semantics<parallel>, #tpu.dimension_semantics<parallel>], iteration_bounds = array<i64: 2, 2>, scalar_prefetch = 0 : i64, scratch_operands = 0 : i64, tpu.core_type = #tpu.core_type<tc>, window_params = [{transform_indices = @transform_0, window_bounds = array<i64: 1, 4, 256>}, {pipeline_mode = #tpu.pipeline_mode<synchronous>, transform_indices = @transform_1, window_bounds = array<i64: 16, 4>}, {pipeline_mode = #tpu.pipeline_mode<synchronous>, transform_indices = @transform_2, window_bounds = array<i64: 16, 1>}, {pipeline_mode = #tpu.pipeline_mode<synchronous>, transform_indices = @transform_3, window_bounds = array<i64: 8, 16>}, {pipeline_mode = #tpu.pipeline_mode<synchronous>, transform_indices = @transform_4, window_bounds = array<i64: 8, 1>}, {transform_indices = @transform_5, window_bounds = array<i64: 1, 8, 256>}]} {
    %c0 = arith.constant 0 : index
    %c0_0 = arith.constant 0 : index
    %0 = vector.load %arg3[%c0, %c0_0] : memref<16x4xf32, #tpu.memory_space<vmem>>, vector<16x4xf32>
    %c0_1 = arith.constant 0 : index
    %c0_2 = arith.constant 0 : index
    %1 = vector.load %arg5[%c0_1, %c0_2] : memref<8x16xf32, #tpu.memory_space<vmem>>, vector<8x16xf32>
    %c0_3 = arith.constant 0 : index
    %c0_4 = arith.constant 0 : index
    %2 = vector.load %arg4[%c0_3, %c0_4] : memref<16x1xf32, #tpu.memory_space<vmem>>, vector<16x1xf32>
    %c0_5 = arith.constant 0 : index
    %c0_6 = arith.constant 0 : index
    %3 = vector.load %arg6[%c0_5, %c0_6] : memref<8x1xf32, #tpu.memory_space<vmem>>, vector<8x1xf32>
    %c0_7 = arith.constant 0 : index
    %c0_8 = arith.constant 0 : index
    %c0_9 = arith.constant 0 : index
    %4 = vector.load %arg2[%c0_7, %c0_8, %c0_9] : memref<1x4x256xf32, #tpu.memory_space<vmem>>, vector<1x4x256xf32>
    %5 = vector.shape_cast %4 : vector<1x4x256xf32> to vector<4x256xf32>
    %cst = arith.constant dense<0.000000e+00> : vector<16x256xf32>
    %6 = tpu.matmul %0, %5, %cst {dimension_numbers = #tpu.dot_dimension_numbers<[1], [0], [0], [1], [0, 0, 1, 1], [], []>} : vector<16x4xf32>, vector<4x256xf32>, vector<16x256xf32> -> vector<16x256xf32>
    %7 = vector.broadcast %2 : vector<16x1xf32> to vector<16x256xf32>
    %8 = arith.addf %6, %7 : vector<16x256xf32>
    %cst_10 = arith.constant 0.000000e+00 : f32
    %9 = vector.broadcast %cst_10 : f32 to vector<16x256xf32>
    %10 = arith.maximumf %8, %9 : vector<16x256xf32>
    %cst_11 = arith.constant dense<0.000000e+00> : vector<8x256xf32>
    %11 = tpu.matmul %1, %10, %cst_11 {dimension_numbers = #tpu.dot_dimension_numbers<[1], [0], [0], [1], [0, 0, 1, 1], [], []>} : vector<8x16xf32>, vector<16x256xf32>, vector<8x256xf32> -> vector<8x256xf32>
    %12 = vector.broadcast %3 : vector<8x1xf32> to vector<8x256xf32>
    %13 = arith.addf %11, %12 : vector<8x256xf32>
    %cst_12 = arith.constant 0.000000e+00 : f32
    %14 = vector.broadcast %cst_12 : f32 to vector<8x256xf32>
    %15 = arith.maximumf %13, %14 : vector<8x256xf32>
    %c0_13 = arith.constant 0 : index
    %c0_14 = arith.constant 0 : index
    %c0_15 = arith.constant 0 : index
    %16 = vector.load %arg7[%c0_13, %c0_14, %c0_15] : memref<1x8x256xf32, #tpu.memory_space<vmem>>, vector<1x8x256xf32>
    %17 = vector.shape_cast %16 : vector<1x8x256xf32> to vector<8x256xf32>
    %18 = vector.shape_cast %15 : vector<8x256xf32> to vector<1x8x256xf32>
    tpu.vector_store %arg7[%c0_13, %c0_14, %c0_15], %18 {strides = array<i32>} : memref<1x8x256xf32, #tpu.memory_space<vmem>>, vector<1x8x256xf32>,
    return
  }
  func.func @transform_0(%arg0: i32, %arg1: i32) -> (i32, i32, i32) {
    %c0_i32 = arith.constant 0 : i32
    %c0_i32_0 = arith.constant 0 : i32
    return %arg0, %c0_i32, %arg1 : i32, i32, i32
  }
  func.func @transform_1(%arg0: i32, %arg1: i32) -> (i32, i32) {
    %c0_i32 = arith.constant 0 : i32
    %c0_i32_0 = arith.constant 0 : i32
    %c0_i32_1 = arith.constant 0 : i32
    return %c0_i32, %c0_i32_0 : i32, i32
  }
  func.func @transform_2(%arg0: i32, %arg1: i32) -> (i32, i32) {
    %c0_i32 = arith.constant 0 : i32
    %c0_i32_0 = arith.constant 0 : i32
    %c0_i32_1 = arith.constant 0 : i32
    return %c0_i32, %c0_i32_0 : i32, i32
  }
  func.func @transform_3(%arg0: i32, %arg1: i32) -> (i32, i32) {
    %c0_i32 = arith.constant 0 : i32
    %c0_i32_0 = arith.constant 0 : i32
    %c0_i32_1 = arith.constant 0 : i32
    return %c0_i32, %c0_i32_0 : i32, i32
  }
  func.func @transform_4(%arg0: i32, %arg1: i32) -> (i32, i32) {
    %c0_i32 = arith.constant 0 : i32
    %c0_i32_0 = arith.constant 0 : i32
    %c0_i32_1 = arith.constant 0 : i32
    return %c0_i32, %c0_i32_0 : i32, i32
  }
  func.func @transform_5(%arg0: i32, %arg1: i32) -> (i32, i32, i32) {
    %c0_i32 = arith.constant 0 : i32
    %c0_i32_0 = arith.constant 0 : i32
    return %arg0, %c0_i32, %arg1 : i32, i32, i32
  }
}

</mosaic_0001>

<llo_original>
// kernel: tpu_custom_call.1
$region0: #{tpu_custom_call.1}
  #allocation0 [shape = 'u32[]', space=smem, size = 0x4, offset = 0x4, fixed_abs, tag = 'smem constant byte address 0x4 - core index']
  #allocation1 [shape = 'u32[144,128]{1,0:T(1,128)}', space=vmem, size = 0x12000, scoped, tag = 'internal scratch']
  %s0 = inlined_call_operand.vmem [shape: f32[2,4,512], index: 0, kind: input, shape index: {}]
  %s1 = inlined_call_operand.vmem [shape: f32[16,4], index: 1, kind: input, shape index: {}]
  %s2 = inlined_call_operand.vmem [shape: f32[16,1], index: 2, kind: input, shape index: {}]
  %s3 = inlined_call_operand.vmem [shape: f32[8,16], index: 3, kind: input, shape index: {}]
  %s4 = inlined_call_operand.vmem [shape: f32[8,1], index: 4, kind: input, shape index: {}]
  %s5 = inlined_call_operand.hbm [shape: f32[2,8,512], index: 5, kind: output, shape index: {}]
  %s6 = sld [smem:[#allocation0]]
  $region53: #{tpu_custom_call.1} parent=0
    _
  %s8 = ssub.s32 1, %s6
  %s9 = scalar_select 0, %s8, %s6
  $region1: #{tpu_custom_call.1} parent=0
    #allocation2 [shape = 'u8[16384]{0}', space=vmem, size = 0x4000, scoped, tag = 'output window, operand 0']
    #allocation3 [shape = 's32[2]{0}', space=sflag, size = 0x8, scoped, tag = 'scoped memory for tpu_custom_call.1']
    %10 = vsyncpa [#allocation3], 0
    %s11 = scalar_lea.sflag [#allocation3], 1
    %12 = vsyncpa %s11, 0
    loop: start=0, step=1, limit=6
    $region2: #{tpu_custom_call.1} parent=1 // loop_pre_header
      _
    $region3: #{tpu_custom_call.1} parent=1 // loop_header
      %s14 = sphi 0, %s18
      %p15 = scmp.ge.s32.totalorder %s14, 6
      %s21 = sphi 0, %s33
      %s22 = sphi 0, %s29
      %s23 = sphi 0, %s21
      %s24 = sphi 0, %s22
      %s25 = sphi 0, %s23
      %s26 = sphi 0, %s24
      %s38 = sphi 0, %s40
      %s41 = sphi 0, %s38
      %s42 = sphi 0, %s41
      %s58 = sphi 0, %s42
      %s62 = sphi 0, %s62
      %s64 = sphi 0, %s62
      %s65 = sphi 0, %s64
      %s79 = sphi 0, %s65
      %s83 = sphi 0, %s83
      %s85 = sphi 0, %s83
      %s86 = sphi 0, %s85
      %s100 = sphi 0, %s86
      %s104 = sphi 0, %s104
      %s106 = sphi 0, %s104
      %s107 = sphi 0, %s106
      %s121 = sphi 0, %s107
      %s125 = sphi 0, %s125
      %s127 = sphi 0, %s125
      %s128 = sphi 0, %s127
      %s142 = sphi 0, %s128
      %s150 = sphi 0, %s152
      %s153 = sphi 0, %s150
      %s154 = sphi 0, %s153
      %s170 = sphi 0, %s154
    $region4: #{tpu_custom_call.1} parent=1 // loop_header_branch
      %17 = sbr.rel (%p15) target = $region8
    $region5: #{tpu_custom_call.1} parent=1 // loop_body
      %s19 = ssub.s32 %s14, 1
      %s20 = ssub.s32 %s14, 2
      %s27 = sadd.s32 1, %s22
      %p28 = scmp.ge.s32.totalorder %s27, 2
      %s29 = scalar_select %p28, 0, %s27
      %s30 = sadd.s32 1, %s21
      %s31 = scalar_select %p28, %s30, %s21
      %p32 = scmp.ge.s32.totalorder %s31, 2
      %s33 = scalar_select %p32, 0, %s31
      %s34 = ssub.s32 %s21, %s33
      %s35 = ssub.s32 %s22, %s29
      %s36 = sor.u32 %s34, %s35
      %p37 = scmp.eq.s32.totalorder %s36, 0
      %s39 = sadd.s32 %s38, 1
      %s40 = scalar_select %p37, %s38, %s39
      %p43 = pneg %p37
      %p44 = scmp.eq.s32.totalorder %s14, 3
      %p45 = por %p43, %p44
      %p46 = scmp.ne.s32.totalorder %s38, %s41
      %p47 = scmp.eq.s32.totalorder %s14, 0
      %p48 = por %p46, %p47
      %p49 = scmp.ne.s32.totalorder %s38, %s41
      %p50 = scmp.eq.s32.totalorder %s19, 3
      %p51 = por %p49, %p50
      %p52 = scmp.ne.s32.totalorder %s41, %s42
      %p53 = scmp.eq.s32.totalorder %s19, 0
      %p54 = por %p52, %p53
      %p55 = scmp.ne.s32.totalorder %s41, %s42
      %p56 = scmp.eq.s32.totalorder %s20, 3
      %p57 = por %p55, %p56
      %p59 = scmp.ne.s32.totalorder %s42, %s58
      %p60 = scmp.eq.s32.totalorder %s20, 0
      %p61 = por %p59, %p60
      %s63 = sadd.s32 %s62, 1
      %p66 = scmp.eq.s32.totalorder %s14, 3
      %p67 = scmp.ne.s32.totalorder %s62, %s64
      %p68 = scmp.eq.s32.totalorder %s14, 0
      %p69 = por %p67, %p68
      %p70 = scmp.ne.s32.totalorder %s62, %s64
      %p71 = scmp.eq.s32.totalorder %s19, 3
      %p72 = por %p70, %p71
      %p73 = scmp.ne.s32.totalorder %s64, %s65
      %p74 = scmp.eq.s32.totalorder %s19, 0
      %p75 = por %p73, %p74
      %p76 = scmp.ne.s32.totalorder %s64, %s65
      %p77 = scmp.eq.s32.totalorder %s20, 3
      %p78 = por %p76, %p77
      %p80 = scmp.ne.s32.totalorder %s65, %s79
      %p81 = scmp.eq.s32.totalorder %s20, 0
      %p82 = por %p80, %p81
      %s84 = sadd.s32 %s83, 1
      %p87 = scmp.eq.s32.totalorder %s14, 3
      %p88 = scmp.ne.s32.totalorder %s83, %s85
      %p89 = scmp.eq.s32.totalorder %s14, 0
      %p90 = por %p88, %p89
      %p91 = scmp.ne.s32.totalorder %s83, %s85
      %p92 = scmp.eq.s32.totalorder %s19, 3
      %p93 = por %p91, %p92
      %p94 = scmp.ne.s32.totalorder %s85, %s86
      %p95 = scmp.eq.s32.totalorder %s19, 0
      %p96 = por %p94, %p95
      %p97 = scmp.ne.s32.totalorder %s85, %s86
      %p98 = scmp.eq.s32.totalorder %s20, 3
      %p99 = por %p97, %p98
      %p101 = scmp.ne.s32.totalorder %s86, %s100
      %p102 = scmp.eq.s32.totalorder %s20, 0
      %p103 = por %p101, %p102
      %s105 = sadd.s32 %s104, 1
      %p108 = scmp.eq.s32.totalorder %s14, 3
      %p109 = scmp.ne.s32.totalorder %s104, %s106
      %p110 = scmp.eq.s32.totalorder %s14, 0
      %p111 = por %p109, %p110
      %p112 = scmp.ne.s32.totalorder %s104, %s106
      %p113 = scmp.eq.s32.totalorder %s19, 3
      %p114 = por %p112, %p113
      %p115 = scmp.ne.s32.totalorder %s106, %s107
      %p116 = scmp.eq.s32.totalorder %s19, 0
      %p117 = por %p115, %p116
      %p118 = scmp.ne.s32.totalorder %s106, %s107
      %p119 = scmp.eq.s32.totalorder %s20, 3
      %p120 = por %p118, %p119
      %p122 = scmp.ne.s32.totalorder %s107, %s121
      %p123 = scmp.eq.s32.totalorder %s20, 0
      %p124 = por %p122, %p123
      %s126 = sadd.s32 %s125, 1
      %p129 = scmp.eq.s32.totalorder %s14, 3
      %p130 = scmp.ne.s32.totalorder %s125, %s127
      %p131 = scmp.eq.s32.totalorder %s14, 0
      %p132 = por %p130, %p131
      %p133 = scmp.ne.s32.totalorder %s125, %s127
      %p134 = scmp.eq.s32.totalorder %s19, 3
      %p135 = por %p133, %p134
      %p136 = scmp.ne.s32.totalorder %s127, %s128
      %p137 = scmp.eq.s32.totalorder %s19, 0
      %p138 = por %p136, %p137
      %p139 = scmp.ne.s32.totalorder %s127, %s128
      %p140 = scmp.eq.s32.totalorder %s20, 3
      %p141 = por %p139, %p140
      %p143 = scmp.ne.s32.totalorder %s128, %s142
      %p144 = scmp.eq.s32.totalorder %s20, 0
      %p145 = por %p143, %p144
      %s146 = ssub.s32 %s21, %s33
      %s147 = ssub.s32 %s22, %s29
      %s148 = sor.u32 %s146, %s147
      %p149 = scmp.eq.s32.totalorder %s148, 0
      %s151 = sadd.s32 %s150, 1
      %s152 = scalar_select %p149, %s150, %s151
      %p155 = pneg %p149
      %p156 = scmp.eq.s32.totalorder %s14, 3
      %p157 = por %p155, %p156
      %p158 = scmp.ne.s32.totalorder %s150, %s153
      %p159 = scmp.eq.s32.totalorder %s14, 0
      %p160 = por %p158, %p159
      %p161 = scmp.ne.s32.totalorder %s150, %s153
      %p162 = scmp.eq.s32.totalorder %s19, 3
      %p163 = por %p161, %p162
      %p164 = scmp.ne.s32.totalorder %s153, %s154
      %p165 = scmp.eq.s32.totalorder %s19, 0
      %p166 = por %p164, %p165
      %p167 = scmp.ne.s32.totalorder %s153, %s154
      %p168 = scmp.eq.s32.totalorder %s20, 3
      %p169 = por %p167, %p168
      %p171 = scmp.ne.s32.totalorder %s154, %s170
      %p172 = scmp.eq.s32.totalorder %s20, 0
      %p173 = por %p171, %p172
      %p174 = scmp.le.s32.totalorder 1, %s14
      %p175 = scmp.lt.s32.totalorder %s14, 5
      %p176 = pnand %p174, %p175
      %p177 = pneg %p176
      // Predicated region
      $region9: #{tpu_custom_call.1} parent=5 // pred_check
        _
      $region10: #{tpu_custom_call.1} parent=5 // pred_check_branch
        %179 = sbr.rel (%p176) target = $region12
      $region11: #{tpu_custom_call.1} parent=5 // pred_region
        %s180 = ssub.s32 %s14, 1
        // Predicated region
        $region13: #{tpu_custom_call.1} parent=11 // pred_check
          %p181 = pneg %p75
        $region14: #{tpu_custom_call.1} parent=11 // pred_check_branch
          %183 = sbr.rel (%p181) target = $region16
        $region15: #{tpu_custom_call.1} parent=11 // pred_region
          _
        $region16: #{tpu_custom_call.1} parent=11 // pred_fallthru
          _
        // Predicated region
        $region17: #{tpu_custom_call.1} parent=11 // pred_check
          %p184 = pneg %p96
        $region18: #{tpu_custom_call.1} parent=11 // pred_check_branch
          %186 = sbr.rel (%p184) target = $region20
        $region19: #{tpu_custom_call.1} parent=11 // pred_region
          _
        $region20: #{tpu_custom_call.1} parent=11 // pred_fallthru
          _
        // Predicated region
        $region21: #{tpu_custom_call.1} parent=11 // pred_check
          %p187 = pneg %p117
        $region22: #{tpu_custom_call.1} parent=11 // pred_check_branch
          %189 = sbr.rel (%p187) target = $region24
        $region23: #{tpu_custom_call.1} parent=11 // pred_region
          _
        $region24: #{tpu_custom_call.1} parent=11 // pred_fallthru
          _
        // Predicated region
        $region25: #{tpu_custom_call.1} parent=11 // pred_check
          %p190 = pneg %p138
        $region26: #{tpu_custom_call.1} parent=11 // pred_check_branch
          %192 = sbr.rel (%p190) target = $region28
        $region27: #{tpu_custom_call.1} parent=11 // pred_region
          _
        $region28: #{tpu_custom_call.1} parent=11 // pred_fallthru
          _
      $region12: #{tpu_custom_call.1} parent=5 // pred_fallthru
        _
      %p193 = scmp.lt.s32.totalorder %s14, 4
      // Predicated region
      $region29: #{tpu_custom_call.1} parent=5 // pred_check
        %p194 = pneg %p193
      $region30: #{tpu_custom_call.1} parent=5 // pred_check_branch
        %196 = sbr.rel (%p194) target = $region32
      $region31: #{tpu_custom_call.1} parent=5 // pred_region
        // Predicated region
        $region33: #{tpu_custom_call.1} parent=31 // pred_check
          %p197 = pneg %p48
        $region34: #{tpu_custom_call.1} parent=31 // pred_check_branch
          %199 = sbr.rel (%p197) target = $region36
        $region35: #{tpu_custom_call.1} parent=31 // pred_region
          %s200 = smul.u32 2, %s22
          %p201 = scmp.lt.s32.totalorder %s21, 1
          %s202 = scalar_select %p201, %s21, 1
          %p203 = scmp.lt.s32.totalorder %s200, 3
          %s204 = scalar_select %p203, %s200, 3
          %s205 = smul.addr %s202, 4
          %s206 = sadd.s32 %s204, %s205
          %s207 = smul.addr %s206, 4
          %s208 = scalar_lea.vmem %s0, %s207
          %s209 = smul.u32 2, %s22
        $region36: #{tpu_custom_call.1} parent=31 // pred_fallthru
          _
      $region32: #{tpu_custom_call.1} parent=5 // pred_fallthru
        _
      %p210 = scmp.le.s32.totalorder 1, %s14
      %p211 = scmp.lt.s32.totalorder %s14, 5
      %p212 = pnand %p210, %p211
      %p213 = pneg %p212
      // Predicated region
      $region37: #{tpu_custom_call.1} parent=5 // pred_check
        _
      $region38: #{tpu_custom_call.1} parent=5 // pred_check_branch
        %215 = sbr.rel (%p212) target = $region40
      $region39: #{tpu_custom_call.1} parent=5 // pred_region
        %s216 = ssub.s32 %s14, 1
        %s217 = smul.u32 2, %s24
        %p218 = scmp.lt.s32.totalorder %s23, 1
        %s219 = scalar_select %p218, %s23, 1
        %p220 = scmp.lt.s32.totalorder %s217, 3
        %s221 = scalar_select %p220, %s217, 3
        %s222 = smul.addr %s219, 4
        %s223 = sadd.s32 %s221, %s222
        %s224 = smul.addr %s223, 4
        %s225 = scalar_lea.vmem %s0, %s224
        %p226 = pneg %p54
        %p227 = pneg %p51
        %p228 = pneg %p75
        %p229 = pneg %p72
        %p230 = pneg %p96
        %p231 = pneg %p93
        %p232 = pneg %p117
        %p233 = pneg %p114
        %p234 = pneg %p138
        %p235 = pneg %p135
        %p236 = pneg %p166
        %p237 = pneg %p163
        %s238 = sand.u32 %s153, 1
        %s239 = scalar_lea.sflag [#allocation3], %s238
        %s240 = sand.u32 %s153, 1
        %s241 = smul.addr %s240, 16
        %s242 = scalar_lea.vmem [#allocation2], %s241
        %s243 = smul.u32 2, %s24
        %p244 = scmp.lt.s32.totalorder %s23, 1
        %s245 = scalar_select %p244, %s23, 1
        %p246 = scmp.lt.s32.totalorder %s243, 3
        %s247 = scalar_select %p246, %s243, 3
        %s248 = smul.addr %s245, 4
        %s249 = sadd.s32 %s247, %s248
        %s250 = smul.addr %s249, 4
        %s251 = scalar_lea.vmem %s0, %s250
        %s252 = smul.u32 2, %s24
        %s253 = smul.u32 2, %s24
        %v254 = vld [vmem:[%s1] sm:$0xff]
        %v255 = vld [vmem:[%s1 + $0x8] sm:$0xff]
        %v256 = vld [vmem:[%s3] sm:$0xff]
        %v257 = vld [vmem:[%s2] sm:$0xff]
        %v258 = vld [vmem:[%s2 + $0x8] sm:$0xff]
        %v259 = vld [vmem:[%s4] sm:$0xff]
        %v260 = vld [vmem:[%s251] sm:$0xff]
        %262 = vset.pattern.permute.xlu0 0
        %263 = vperm.xlu0 %262, %v257
        %v264 = vpop.permute.xlu0 %263
        %267 = vset.pattern.permute.xlu0 0
        %268 = vperm.xlu0 %267, %v258
        %v269 = vpop.permute.xlu0 %268
        %v272 = vcombine.high %v260, %v260
        %vm273 = vcmask 31744
        %v275 = vsel %vm273, %v254, 0
        %v278 = vsel %vm273, %v255, 0
        %vm280 = vcmask 1043456
        %v281 = vsel %vm280, %v260, 0
        %v283 = vsel %vm280, %v272, 0
        %285 = vmatprep.subr.mxu0 %v283
        %286 = vmatpush1.msra.mxu0 %v281
        %287 = vmatprep.subr.mxu0 0.0
        %288 = vmatpush1.msra.mxu0 0.0
        %289 = vmatprep.subr.mxu0 0.0
        %290 = vmatpush1.msra.mxu0 0.0
        %291 = vmatprep.subr.mxu0 0.0
        %292 = vmatpush1.msra.mxu0 0.0
        %293 = vmatprep.subr.mxu0 0.0
        %294 = vmatpush1.msra.mxu0 0.0
        %295 = vmatprep.subr.mxu0 0.0
        %296 = vmatpush1.msra.mxu0 0.0
        %297 = vmatprep.subr.mxu0 0.0
        %298 = vmatpush1.msra.mxu0 0.0
        %299 = vmatprep.subr.mxu0 0.0
        %300 = vmatpush1.msra.mxu0 0.0
        %301 = vmatprep.subr.mxu0 0.0
        %302 = vmatpush1.msra.mxu0 0.0
        %303 = vmatprep.subr.mxu0 0.0
        %304 = vmatpush1.msra.mxu0 0.0
        %305 = vmatprep.subr.mxu0 0.0
        %306 = vmatpush1.msra.mxu0 0.0
        %307 = vmatprep.subr.mxu0 0.0
        %308 = vmatpush1.msra.mxu0 0.0
        %309 = vmatprep.subr.mxu0 0.0
        %310 = vmatpush1.msra.mxu0 0.0
        %311 = vmatprep.subr.mxu0 0.0
        %312 = vmatpush1.msra.mxu0 0.0
        %313 = vmatprep.subr.mxu0 0.0
        %314 = vmatpush1.msra.mxu0 0.0
        %315 = vmatprep.subr.mxu0 0.0
        %316 = vmatpush1.msra.mxu0 0.0
        %317 = vmatprep.subr.mxu0 0.0
        %318 = vmatpush1.msra.mxu0 0.0
        %319 = vmatprep.subr.mxu0 0.0
        %320 = vmatpush1.msra.mxu0 0.0
        %321 = vmatprep.subr.mxu0 0.0
        %322 = vmatpush1.msra.mxu0 0.0
        %323 = vmatprep.subr.mxu0 0.0
        %324 = vmatpush1.msra.mxu0 0.0
        %325 = vmatprep.subr.mxu0 0.0
        %326 = vmatpush1.msra.mxu0 0.0
        %327 = vmatprep.subr.mxu0 0.0
        %328 = vmatpush1.msra.mxu0 0.0
        %329 = vmatprep.subr.mxu0 0.0
        %330 = vmatpush1.msra.mxu0 0.0
        %331 = vmatprep.subr.mxu0 0.0
        %332 = vmatpush1.msra.mxu0 0.0
        %333 = vmatprep.subr.mxu0 0.0
        %334 = vmatpush1.msra.mxu0 0.0
        %335 = vmatprep.subr.mxu0 0.0
        %336 = vmatpush1.msra.mxu0 0.0
        %337 = vmatprep.subr.mxu0 0.0
        %338 = vmatpush1.msra.mxu0 0.0
        %339 = vmatprep.subr.mxu0 0.0
        %340 = vmatpush1.msra.mxu0 0.0
        %341 = vmatprep.subr.mxu0 0.0
        %342 = vmatpush1.msra.mxu0 0.0
        %343 = vmatprep.subr.mxu0 0.0
        %344 = vmatpush1.msra.mxu0 0.0
        %345 = vmatprep.subr.mxu0 0.0
        %346 = vmatpush1.msra.mxu0 0.0
        %347 = vmatprep.subr.mxu0 0.0
        %348 = vmatpush1.msra.mxu0 0.0
        %349 = vmatprep.mubr.f32.mxu0 0.0
        %350 = vmatmul.mubr.f32.gmra.mrb[0].mxu0 %v275
        %v351 = vpop.f32.mrb[0].mxu0
        %v352 = vadd.f32 %v264, %v351
        %v353 = vpop.f32.mrb[0].mxu0
        %v354 = vadd.f32 %v264, %v353
        %355 = vmatprep.mubr.f32.mxu0 0.0
        %356 = vmatmul.mubr.f32.gmra.mrb[0].mxu0 %v278
        %v357 = vpop.f32.mrb[0].mxu0
        %v358 = vadd.f32 %v269, %v357
        %v359 = vpop.f32.mrb[0].mxu0
        %v360 = vadd.f32 %v269, %v359
        %361 = vdwg.mxu0
        %v362 = vmax.f32 %v352, 0.0
        %v363 = vmax.f32 %v354, 0.0
        %v364 = vmax.f32 %v358, 0.0
        %v365 = vmax.f32 %v360, 0.0
        %367 = vset.pattern.permute.xlu0 0
        %368 = vperm.xlu0 %367, %v259
        %v369 = vpop.permute.xlu0 %368
        %vm371 = vcmask 130048
        %v373 = vsel %vm371, %v256, 0
        %375 = vmatprep.subr.mxu0 %v363
        %376 = vmatpush1.msra.mxu0 %v362
        %377 = vmatprep.subr.mxu0 %v365
        %378 = vmatpush1.msra.mxu0 %v364
        %379 = vmatprep.subr.mxu0 0.0
        %380 = vmatpush1.msra.mxu0 0.0
        %381 = vmatprep.subr.mxu0 0.0
        %382 = vmatpush1.msra.mxu0 0.0
        %383 = vmatprep.subr.mxu0 0.0
        %384 = vmatpush1.msra.mxu0 0.0
        %385 = vmatprep.subr.mxu0 0.0
        %386 = vmatpush1.msra.mxu0 0.0
        %387 = vmatprep.subr.mxu0 0.0
        %388 = vmatpush1.msra.mxu0 0.0
        %389 = vmatprep.subr.mxu0 0.0
        %390 = vmatpush1.msra.mxu0 0.0
        %391 = vmatprep.subr.mxu0 0.0
        %392 = vmatpush1.msra.mxu0 0.0
        %393 = vmatprep.subr.mxu0 0.0
        %394 = vmatpush1.msra.mxu0 0.0
        %395 = vmatprep.subr.mxu0 0.0
        %396 = vmatpush1.msra.mxu0 0.0
        %397 = vmatprep.subr.mxu0 0.0
        %398 = vmatpush1.msra.mxu0 0.0
        %399 = vmatprep.subr.mxu0 0.0
        %400 = vmatpush1.msra.mxu0 0.0
        %401 = vmatprep.subr.mxu0 0.0
        %402 = vmatpush1.msra.mxu0 0.0
        %403 = vmatprep.subr.mxu0 0.0
        %404 = vmatpush1.msra.mxu0 0.0
        %405 = vmatprep.subr.mxu0 0.0
        %406 = vmatpush1.msra.mxu0 0.0
        %407 = vmatprep.subr.mxu0 0.0
        %408 = vmatpush1.msra.mxu0 0.0
        %409 = vmatprep.subr.mxu0 0.0
        %410 = vmatpush1.msra.mxu0 0.0
        %411 = vmatprep.subr.mxu0 0.0
        %412 = vmatpush1.msra.mxu0 0.0
        %413 = vmatprep.subr.mxu0 0.0
        %414 = vmatpush1.msra.mxu0 0.0
        %415 = vmatprep.subr.mxu0 0.0
        %416 = vmatpush1.msra.mxu0 0.0
        %417 = vmatprep.subr.mxu0 0.0
        %418 = vmatpush1.msra.mxu0 0.0
        %419 = vmatprep.subr.mxu0 0.0
        %420 = vmatpush1.msra.mxu0 0.0
        %421 = vmatprep.subr.mxu0 0.0
        %422 = vmatpush1.msra.mxu0 0.0
        %423 = vmatprep.subr.mxu0 0.0
        %424 = vmatpush1.msra.mxu0 0.0
        %425 = vmatprep.subr.mxu0 0.0
        %426 = vmatpush1.msra.mxu0 0.0
        %427 = vmatprep.subr.mxu0 0.0
        %428 = vmatpush1.msra.mxu0 0.0
        %429 = vmatprep.subr.mxu0 0.0
        %430 = vmatpush1.msra.mxu0 0.0
        %431 = vmatprep.subr.mxu0 0.0
        %432 = vmatpush1.msra.mxu0 0.0
        %433 = vmatprep.subr.mxu0 0.0
        %434 = vmatpush1.msra.mxu0 0.0
        %435 = vmatprep.subr.mxu0 0.0
        %436 = vmatpush1.msra.mxu0 0.0
        %437 = vmatprep.subr.mxu0 0.0
        %438 = vmatpush1.msra.mxu0 0.0
        %439 = vmatprep.mubr.f32.mxu0 0.0
        %440 = vmatmul.mubr.f32.gmra.mrb[0].mxu0 %v373
        %v441 = vpop.f32.mrb[0].mxu0
        %v442 = vadd.f32 %v369, %v441
        %v443 = vpop.f32.mrb[0].mxu0
        %v444 = vadd.f32 %v369, %v443
        %445 = vdwg.mxu0
        %v446 = vmax.f32 %v442, 0.0
        %v447 = vmax.f32 %v444, 0.0
        %448 = vst [vmem:[%s242] sm:$0xff] %v446
        %449 = vst [vmem:[%s242 + $0x8] sm:$0xff] %v447
        %s450 = sand.u32 %s153, 1
        %s451 = scalar_lea.sflag [#allocation3], %s450
        %s452 = sand.u32 %s153, 1
        %s453 = smul.addr %s452, 16
        %s454 = scalar_lea.vmem [#allocation2], %s453
        // Predicated region
        $region41: #{tpu_custom_call.1} parent=39 // pred_check
          %p455 = pneg %p163
        $region42: #{tpu_custom_call.1} parent=39 // pred_check_branch
          %457 = sbr.rel (%p455) target = $region44
        $region43: #{tpu_custom_call.1} parent=39 // pred_region
          %s458 = smul.u32 2, %s24
          %s460 = ssub.s32 256, 256
          %461 = vsyncadd %s451, %s460
          %s462 = smul.addr %s23, 4
          %s463 = sadd.s32 %s458, %s462
          %s464 = smul.addr %s463, 128
          %s465 = scalar_lea.hbm %s5, %s464
          %s467 = sshll.u32 %s454, 4
          %s468 = int_to_ptr.vmem [resolvable:$true] %s467
          %470 = dma.vmem_to_hbm [thread:$0]  %s468, 256, %s465, %s451
        $region44: #{tpu_custom_call.1} parent=39 // pred_fallthru
          _
      $region40: #{tpu_custom_call.1} parent=5 // pred_fallthru
        _
      %p471 = scmp.le.s32.totalorder 2, %s14
      // Predicated region
      $region45: #{tpu_custom_call.1} parent=5 // pred_check
        %p472 = pneg %p471
      $region46: #{tpu_custom_call.1} parent=5 // pred_check_branch
        %474 = sbr.rel (%p472) target = $region48
      $region47: #{tpu_custom_call.1} parent=5 // pred_region
        %s475 = ssub.s32 %s14, 2
        // Predicated region
        $region49: #{tpu_custom_call.1} parent=47 // pred_check
          %p476 = pneg %p169
        $region50: #{tpu_custom_call.1} parent=47 // pred_check_branch
          %478 = sbr.rel (%p476) target = $region52
        $region51: #{tpu_custom_call.1} parent=47 // pred_region
          %s479 = sand.u32 %s154, 1
          %s480 = scalar_lea.sflag [#allocation3], %s479
          %s481 = sand.u32 %s154, 1
          %s482 = smul.addr %s481, 16
          %s483 = scalar_lea.vmem [#allocation2], %s482
          %484 = dma.done %s480, 256
        $region52: #{tpu_custom_call.1} parent=47 // pred_fallthru
          _
      $region48: #{tpu_custom_call.1} parent=5 // pred_fallthru
        _
    $region6: #{tpu_custom_call.1} parent=1 // loop_footer
      %s18 = sadd.s32 1, %s14
    $region7: #{tpu_custom_call.1} parent=1 // loop_footer_branch
      %13 = sbr.rel target = $region3
    $region8: #{tpu_custom_call.1} parent=1 // loop_exit
      _
    %485 = vsyncpa [#allocation3], 1
    %s486 = scalar_lea.sflag [#allocation3], 1
    %487 = vsyncpa %s486, 1

</llo_original>
